<compile_context>
chip_gen: v7x
topology: tpu7x:2x2x1
jax: 0.10.0
libtpu: 0.0.40
codegen_flags: <defaults>
</compile_context>

<pallas_src>
import jax
import jax.numpy as jnp
from jax.experimental import pallas as pl
from jax.experimental.pallas import tpu as pltpu

_POS_W = 1.0
_NEG_W = 0.2
_LANES = 128


def _round_up(x, m):
    return ((x + m - 1) // m) * m


def _device_kind():
    try:
        return jax.devices()[0].device_kind.lower()
    except Exception:
        return ""


def _defaults_for_device(kind):
    """(max_tile_rows, vmem_limit_bytes, multicore) per TPU generation."""
    if "v7" in kind or "7x" in kind:
        # 64 MiB physical VMEM, 2 TensorCores.
        return 4096, 48 * 1024 * 1024, True
    if "v6" in kind or "v5" in kind:
        # 128 MiB physical VMEM, 1 TensorCore.
        return 8192, 64 * 1024 * 1024, False
    return 4096, 32 * 1024 * 1024, False


def _make_bce_kernel(valid_rows, lanes):
    """valid_rows is a trace-time constant (shapes are static), so no scalar
    prefetch is needed to mask the ragged tail."""

    def kernel(x_ref, t_ref, out_ref):
        p = pl.program_id(0)
        s = pl.program_id(1)

        @pl.when(s == 0)
        def _():
            out_ref[...] = jnp.zeros_like(out_ref)

        tile_rows = x_ref.shape[0]
        x = x_ref[...].astype(jnp.float32)
        t = t_ref[...].astype(jnp.float32)

        # In-kernel ragged-tail masking (replaces the old wrapper-side pad):
        # rows at/after `valid_rows` (partial last tile, or a whole tile
        # duplicated by the clamped index_map of an uneven 2-way split) become
        # (x=0, t=-1).  t=-1 gets weight 0 below, and x=0 keeps the bce
        # expression finite even if the out-of-bounds VMEM contents were NaN.
        base_row = (p * pl.num_programs(1) + s) * tile_rows
        row_ids = base_row + jax.lax.broadcasted_iota(
            jnp.int32, (tile_rows, lanes), 0)
        in_range = row_ids < valid_rows
        x = jnp.where(in_range, x, 0.0)
        t = jnp.where(in_range, t, -1.0)

        # Numerically-stable binary_cross_entropy_with_logits, reduction='none':
        #   max(x, 0) - x*t + log1p(exp(-|x|))
        bce = jnp.maximum(x, 0.0) - x * t + jnp.log1p(jnp.exp(-jnp.abs(x)))
        # TODO(synk): on v7x, if the single EUP slot is the measured bottleneck,
        # the exp/log1p chain could run in bf16 (~2x EUP throughput) while the
        # accumulator stays f32 — kept in f32 here to preserve exact numerics.

        # Exact-match pos/neg weighting (identical to the PyTorch module:
        # non-binary targets, including the -1 mask value, get weight 0).
        w = jnp.where(
            t == 1.0,
            jnp.float32(_POS_W),
            jnp.where(t == 0.0, jnp.float32(_NEG_W), jnp.float32(0.0)),
        )
        weighted = bce * w

        # Fold (tile_rows, lanes) into the resident (8, lanes) accumulator
        # block: the reshape keeps (8,128) vreg tiles intact -> pure VPU adds.
        partial = jnp.sum(weighted.reshape(-1, 8, lanes), axis=0)
        out_ref[...] += partial[None]

    return kernel


def bce_with_logits_loss(logits, targets, reduction="mean", *,
                         max_tile_rows=None, vmem_limit_bytes=None,
                         input_buffer_count=None):
    """Pallas forward of the module's BCEWithLogitsLoss.  logits/targets: (B, N)."""
    assert logits.shape == targets.shape
    B = logits.shape[0]
    lanes = _LANES

    kind = _device_kind()
    d_tile, d_vmem, multicore = _defaults_for_device(kind)
    if max_tile_rows is None:
        max_tile_rows = d_tile
    if vmem_limit_bytes is None:
        vmem_limit_bytes = d_vmem
    assert max_tile_rows % 32 == 0 and max_tile_rows >= 32

    x = logits.reshape(-1)
    t = targets.reshape(-1)
    # Stream targets in their native (narrow) dtype; bool -> int8 (1 B/elem).
    if t.dtype == jnp.bool_:
        t = t.astype(jnp.int8)

    total = int(x.shape[0])
    rows = -(-total // lanes)          # true (unpadded) row count -> mask bound

    # Only the sub-128-element lane tail ever needs padding to form the
    # lane-dense (rows, 128) view; targets pad with -1 (weight 0 -> exact).
    if rows * lanes != total:
        x = jnp.pad(x, (0, rows * lanes - total))
        t = jnp.pad(t, (0, rows * lanes - total), constant_values=-1)
    x = x.reshape(rows, lanes)
    t = t.reshape(rows, lanes)

    # tile_rows multiple of 32 => legal for f32/bf16/int8 target tiles.
    tile_rows = min(max_tile_rows, _round_up(rows, 32))
    arr_rows = rows
    if rows < tile_rows:
        # Tiny input (< tile_rows*128 elements): pad it to one full tile so the
        # block never exceeds the array.  Cost is negligible at this size and
        # the in-kernel mask covers these rows anyway.
        x = jnp.pad(x, ((0, tile_rows - rows), (0, 0)))
        t = jnp.pad(t, ((0, tile_rows - rows), (0, 0)), constant_values=-1)
        arr_rows = tile_rows

    num_tiles = -(-arr_rows // tile_rows)
    # 2-way split of the stream: real (CORE_PARALLEL) on 2-TC v7x as soon as
    # there are >=2 tiles; on 1-TC chips only when there is enough work that
    # the (masked) duplicate tile of an odd split is noise.
    num_par = 2 if num_tiles >= (2 if multicore else 4) else 1
    steps = -(-num_tiles // num_par)

    # Tile index for (p, s); clamped so an uneven split never DMAs out of
    # bounds — the kernel's row mask zeroes the duplicated tile's contribution.
    def tile_index(p, s):
        return (jnp.minimum(p * steps + s, num_tiles - 1), 0)

    def make_in_spec():
        if input_buffer_count is None:
            return pl.BlockSpec((tile_rows, lanes), tile_index)
        # Deeper input pipelining (e.g. 3) if xprof shows exposed DMA (v7x).
        return pl.BlockSpec((tile_rows, lanes), tile_index,
                            pipeline_mode=pl.Buffered(int(input_buffer_count)))

    PAR = getattr(pltpu, "PARALLEL", "parallel")
    ARB = getattr(pltpu, "ARBITRARY", "arbitrary")
    CORE_PAR = getattr(pltpu, "CORE_PARALLEL", None)
    axis0 = CORE_PAR if (multicore and num_par == 2 and CORE_PAR is not None) else PAR

    n_elems = arr_rows * lanes
    cost = pl.CostEstimate(
        flops=12 * n_elems,
        transcendentals=2 * n_elems,
        bytes_accessed=int(x.size * x.dtype.itemsize
                           + t.size * t.dtype.itemsize
                           + num_par * 8 * lanes * 4),
    )

    partials = pl.pallas_call(
        _make_bce_kernel(rows, lanes),
        out_shape=jax.ShapeDtypeStruct((num_par, 8, lanes), jnp.float32),
        grid_spec=pltpu.PrefetchScalarGridSpec(
            num_scalar_prefetch=0,
            grid=(num_par, steps),
            in_specs=[make_in_spec(), make_in_spec()],
            out_specs=pl.BlockSpec((1, 8, lanes), lambda p, s: (p, 0, 0)),
        ),
        compiler_params=pltpu.CompilerParams(
            dimension_semantics=(axis0, ARB),
            vmem_limit_bytes=int(vmem_limit_bytes),
        ),
        cost_estimate=cost,
    )(x, t)

    # Single tiny cross-lane reduction over the (num_par, 8, 128) partials,
    # done outside the kernel in f32.
    total_loss = jnp.sum(partials)
    if reduction == "mean":
        # The PyTorch module divides the SUM by batch size (not element count).
        return total_loss / jnp.float32(B)
    if reduction == "sum":
        return total_loss
    raise NotImplementedError(
        "reduction='none' (per-element output) is not implemented in the "
        "Pallas kernel; the module under test only uses 'mean'.")


def _reference(logits, targets, reduction="mean"):
    x = logits.astype(jnp.float32)
    t = targets.astype(jnp.float32)
    bce = jnp.maximum(x, 0.0) - x * t + jnp.log1p(jnp.exp(-jnp.abs(x)))
    pos_id = (t == 1.0).astype(jnp.float32)
    neg_id = (t == 0.0).astype(jnp.float32)
    loss = _POS_W * pos_id * bce + _NEG_W * neg_id * bce
    if reduction == "mean":
        return jnp.sum(loss) / jnp.float32(logits.shape[0])
    return jnp.sum(loss)


if __name__ == "__main__":
    key = jax.random.PRNGKey(0)
    k1, k2, k3, k4 = jax.random.split(key, 4)

    # Test 1: the module's pred_obj[:, :, 0] shape — (batch, num_anchors) with
    # f32 {0,1} targets (as produced by targets[:, :, 0].float()).  Lane-aligned
    # total -> no pad beyond the single (tiny-input) tile fill.
    B, N = 2, 256
    logits = jax.random.normal(k1, (B, N), dtype=jnp.float32)
    targets = jax.random.bernoulli(k2, p=0.3, shape=(B, N)).astype(jnp.float32)
    out = jax.block_until_ready(bce_with_logits_loss(logits, targets))
    ref = _reference(logits, targets)
    assert jnp.allclose(out, ref, rtol=1e-5, atol=1e-5), (out, ref)

    # Test 2: non-lane-aligned total, multi-tile streaming axis, 2-way split
    # with a clamped duplicate tile, ragged last tile masked in-kernel, and
    # narrow (int8) target stream.
    B2, N2 = 2, 8200
    logits2 = jax.random.normal(k3, (B2, N2), dtype=jnp.float32)
    targets2 = jax.random.bernoulli(k4, p=0.3, shape=(B2, N2)).astype(jnp.int8)
    out2 = jax.block_until_ready(
        bce_with_logits_loss(logits2, targets2, max_tile_rows=32))
    ref2 = _reference(logits2, targets2)
    assert jnp.allclose(out2, ref2, rtol=1e-5, atol=1e-5), (out2, ref2)

    print("KERNEL_OK")
</pallas_src>

<mosaic_0001>
module attributes {stable_mosaic.version = 11 : i64} {
  func.func @kernel(%arg0: i32, %arg1: i32, %arg2: memref<32x128xf32, #tpu.memory_space<vmem>>, %arg3: memref<32x128xf32, #tpu.memory_space<vmem>>, %arg4: memref<1x8x128xf32, #tpu.memory_space<vmem>>) attributes {dimension_semantics = [#tpu.dimension_semantics<parallel>, #tpu.dimension_semantics<arbitrary>], iteration_bounds = array<i64: 1, 1>, scalar_prefetch = 0 : i64, scratch_operands = 0 : i64, tpu.core_type = #tpu.core_type<tc>, window_params = [{transform_indices = @transform_0, window_bounds = array<i64: 32, 128>}, {transform_indices = @transform_1, window_bounds = array<i64: 32, 128>}, {transform_indices = @transform_2, window_bounds = array<i64: 1, 8, 128>}]} {
    %c0_i32 = arith.constant 0 : i32
    %0 = arith.cmpi eq, %arg1, %c0_i32 : i32
    %1 = arith.extui %0 : i1 to i32
    %c0_i32_0 = arith.constant 0 : i32
    %2 = arith.cmpi ne, %1, %c0_i32_0 : i32
    scf.if %2 {
      %cst_19 = arith.constant 0.000000e+00 : f32
      %43 = vector.broadcast %cst_19 : f32 to vector<1x8x128xf32>
      %c0_20 = arith.constant 0 : index
      %c0_21 = arith.constant 0 : index
      %c0_22 = arith.constant 0 : index
      %44 = vector.load %arg4[%c0_20, %c0_21, %c0_22] : memref<1x8x128xf32, #tpu.memory_space<vmem>>, vector<1x8x128xf32>
      tpu.vector_store %arg4[%c0_20, %c0_21, %c0_22], %43 {strides = array<i32>} : memref<1x8x128xf32, #tpu.memory_space<vmem>>, vector<1x8x128xf32>,
    } else {
    }
    %c0 = arith.constant 0 : index
    %c0_1 = arith.constant 0 : index
    %3 = vector.load %arg2[%c0, %c0_1] : memref<32x128xf32, #tpu.memory_space<vmem>>, vector<32x128xf32>
    %c0_2 = arith.constant 0 : index
    %c0_3 = arith.constant 0 : index
    %4 = vector.load %arg3[%c0_2, %c0_3] : memref<32x128xf32, #tpu.memory_space<vmem>>, vector<32x128xf32>
    %c1_i32 = arith.constant 1 : i32
    %5 = arith.muli %arg0, %c1_i32 : i32
    %6 = arith.addi %5, %arg1 : i32
    %c32_i32 = arith.constant 32 : i32
    %7 = arith.muli %6, %c32_i32 : i32
    %8 = tpu.iota {dimensions = array<i32: 0>} : vector<32x128xi32>
    %9 = vector.broadcast %7 : i32 to vector<32x128xi32>
    %10 = arith.addi %9, %8 : vector<32x128xi32>
    %c4_i32 = arith.constant 4 : i32
    %11 = vector.broadcast %c4_i32 : i32 to vector<32x128xi32>
    %12 = arith.cmpi slt, %10, %11 : vector<32x128xi32>
    %cst = arith.constant 0.000000e+00 : f32
    %13 = vector.broadcast %cst : f32 to vector<32x128xf32>
    %14 = arith.select %12, %3, %13 : vector<32x128xi1>, vector<32x128xf32>
    %cst_4 = arith.constant -1.000000e+00 : f32
    %15 = vector.broadcast %cst_4 : f32 to vector<32x128xf32>
    %16 = arith.select %12, %4, %15 : vector<32x128xi1>, vector<32x128xf32>
    %cst_5 = arith.constant 0.000000e+00 : f32
    %17 = vector.broadcast %cst_5 : f32 to vector<32x128xf32>
    %18 = arith.maximumf %14, %17 : vector<32x128xf32>
    %19 = arith.mulf %14, %16 : vector<32x128xf32>
    %20 = arith.subf %18, %19 : vector<32x128xf32>
    %21 = math.absf %14 : vector<32x128xf32>
    %cst_6 = arith.constant 0.000000e+00 : f32
    %22 = vector.broadcast %cst_6 : f32 to vector<32x128xf32>
    %23 = arith.subf %22, %21 : vector<32x128xf32>
    %24 = math.exp %23 : vector<32x128xf32>
    %25 = math.log1p %24 : vector<32x128xf32>
    %26 = arith.addf %20, %25 : vector<32x128xf32>
    %cst_7 = arith.constant 1.000000e+00 : f32
    %27 = vector.broadcast %cst_7 : f32 to vector<32x128xf32>
    %28 = arith.cmpf oeq, %16, %27 : vector<32x128xf32>
    %cst_8 = arith.constant 0.000000e+00 : f32
    %29 = vector.broadcast %cst_8 : f32 to vector<32x128xf32>
    %30 = arith.cmpf oeq, %16, %29 : vector<32x128xf32>
    %cst_9 = arith.constant 2.000000e-01 : f32
    %cst_10 = arith.constant 0.000000e+00 : f32
    %31 = vector.broadcast %cst_9 : f32 to vector<32x128xf32>
    %32 = vector.broadcast %cst_10 : f32 to vector<32x128xf32>
    %33 = arith.select %30, %31, %32 : vector<32x128xi1>, vector<32x128xf32>
    %cst_11 = arith.constant 1.000000e+00 : f32
    %34 = vector.broadcast %cst_11 : f32 to vector<32x128xf32>
    %35 = arith.select %28, %34, %33 : vector<32x128xi1>, vector<32x128xf32>
    %36 = arith.mulf %26, %35 : vector<32x128xf32>
    %37 = vector.shape_cast %36 : vector<32x128xf32> to vector<4x8x128xf32>
    %cst_12 = arith.constant dense<0.000000e+00> : vector<8x128xf32>
    %38 = vector.multi_reduction <add>, %37, %cst_12 [0] : vector<4x8x128xf32> to vector<8x128xf32>
    %c0_13 = arith.constant 0 : index
    %c0_14 = arith.constant 0 : index
    %c0_15 = arith.constant 0 : index
    %39 = vector.load %arg4[%c0_13, %c0_14, %c0_15] : memref<1x8x128xf32, #tpu.memory_space<vmem>>, vector<1x8x128xf32>
    %40 = vector.shape_cast %38 : vector<8x128xf32> to vector<1x8x128xf32>
    %41 = arith.addf %39, %40 : vector<1x8x128xf32>
    %c0_16 = arith.constant 0 : index
    %c0_17 = arith.constant 0 : index
    %c0_18 = arith.constant 0 : index
    %42 = vector.load %arg4[%c0_16, %c0_17, %c0_18] : memref<1x8x128xf32, #tpu.memory_space<vmem>>, vector<1x8x128xf32>
    tpu.vector_store %arg4[%c0_16, %c0_17, %c0_18], %41 {strides = array<i32>} : memref<1x8x128xf32, #tpu.memory_space<vmem>>, vector<1x8x128xf32>,
    return
  }
  func.func @transform_0(%arg0: i32, %arg1: i32) -> (i32, i32) {
    %c1_i32 = arith.constant 1 : i32
    %0 = arith.muli %arg0, %c1_i32 : i32
    %1 = arith.addi %0, %arg1 : i32
    %c0_i32 = arith.constant 0 : i32
    %2 = arith.minsi %1, %c0_i32 : i32
    %c0_i32_0 = arith.constant 0 : i32
    %c0_i32_1 = arith.constant 0 : i32
    return %2, %c0_i32_0 : i32, i32
  }
  func.func @transform_1(%arg0: i32, %arg1: i32) -> (i32, i32) {
    %c1_i32 = arith.constant 1 : i32
    %0 = arith.muli %arg0, %c1_i32 : i32
    %1 = arith.addi %0, %arg1 : i32
    %c0_i32 = arith.constant 0 : i32
    %2 = arith.minsi %1, %c0_i32 : i32
    %c0_i32_0 = arith.constant 0 : i32
    %c0_i32_1 = arith.constant 0 : i32
    return %2, %c0_i32_0 : i32, i32
  }
  func.func @transform_2(%arg0: i32, %arg1: i32) -> (i32, i32, i32) {
    %c0_i32 = arith.constant 0 : i32
    %c0_i32_0 = arith.constant 0 : i32
    %c0_i32_1 = arith.constant 0 : i32
    return %arg0, %c0_i32, %c0_i32_0 : i32, i32, i32
  }
}

</mosaic_0001>

<llo_original>
// kernel: tpu_custom_call.1
$region0: #{tpu_custom_call.1}
  #allocation0 [shape = 'u32[]', space=smem, size = 0x4, offset = 0x4, fixed_abs, tag = 'smem constant byte address 0x4 - core index']
  #allocation1 [shape = 'u32[144,128]{1,0:T(1,128)}', space=vmem, size = 0x12000, scoped, tag = 'internal scratch']
  %s0 = inlined_call_operand.hbm [shape: f32[32,128], index: 0, kind: input, shape index: {}]
  %s1 = inlined_call_operand.hbm [shape: f32[32,128], index: 1, kind: input, shape index: {}]
  %s2 = inlined_call_operand.hbm [shape: f32[1,8,128], index: 2, kind: output, shape index: {}]
  %s3 = sld [smem:[#allocation0]]
  $region30: #{tpu_custom_call.1} parent=0
    _
  %s5 = ssub.s32 1, %s3
  %s6 = scalar_select 0, %s5, %s3
  $region1: #{tpu_custom_call.1} parent=0
    #allocation2 [shape = 'u8[16384]{0}', space=vmem, size = 0x4000, scoped, tag = 'input window, operand 0, single buffered']
    #allocation3 [shape = 's32[1]{0}', space=sflag, size = 0x4, scoped, tag = 'scoped memory for tpu_custom_call.1']
    #allocation4 [shape = 's32[1]{0}', space=sflag, size = 0x4, scoped, tag = 'scoped memory for tpu_custom_call.1']
    #allocation5 [shape = 'u8[16384]{0}', space=vmem, size = 0x4000, scoped, tag = 'input window, operand 1, single buffered']
    #allocation6 [shape = 's32[1]{0}', space=sflag, size = 0x4, scoped, tag = 'scoped memory for tpu_custom_call.1']
    #allocation7 [shape = 'u8[4096]{0}', space=vmem, size = 0x1000, scoped, tag = 'output window, operand 0, single buffered']
    %7 = vsyncpa [#allocation3], 0
    %8 = vsyncpa [#allocation6], 0
    %9 = vsyncpa [#allocation4], 0
    // Predicated region
    $region2: #{tpu_custom_call.1} parent=1 // pred_check
      _
    $region3: #{tpu_custom_call.1} parent=1 // pred_check_branch
      %11 = sbr.rel (0) target = $region5
    $region4: #{tpu_custom_call.1} parent=1 // pred_region
      %s12 = sadd.s32 0, 0
      %p13 = scmp.lt.s32.totalorder %s12, 0
      %s14 = scalar_select %p13, %s12, 0
      %s15 = smul.u32 4, %s14
      %s17 = ssub.s32 512, 512
      %18 = vsyncadd [#allocation3], %s17
      %s19 = smul.addr %s15, 128
      %s20 = scalar_lea.hbm %s0, %s19
      %s21 = sshll.u32 [#allocation2], 4
      %s22 = int_to_ptr.vmem [resolvable:$true] %s21
      %27 = dma.hbm_to_vmem [thread:$0]  %s20, 512, %s22, [#allocation3], 128, 128, 8
    $region5: #{tpu_custom_call.1} parent=1 // pred_fallthru
      _
    // Predicated region
    $region6: #{tpu_custom_call.1} parent=1 // pred_check
      _
    $region7: #{tpu_custom_call.1} parent=1 // pred_check_branch
      %29 = sbr.rel (0) target = $region9
    $region8: #{tpu_custom_call.1} parent=1 // pred_region
      %s30 = sadd.s32 0, 0
      %p31 = scmp.lt.s32.totalorder %s30, 0
      %s32 = scalar_select %p31, %s30, 0
      %s33 = smul.u32 4, %s32
      %s35 = ssub.s32 512, 512
      %36 = vsyncadd [#allocation6], %s35
      %s37 = smul.addr %s33, 128
      %s38 = scalar_lea.hbm %s1, %s37
      %s39 = sshll.u32 [#allocation5], 4
      %s40 = int_to_ptr.vmem [resolvable:$true] %s39
      %45 = dma.hbm_to_vmem [thread:$0]  %s38, 512, %s40, [#allocation6], 128, 128, 8
    $region9: #{tpu_custom_call.1} parent=1 // pred_fallthru
      _
    // Predicated region
    $region10: #{tpu_custom_call.1} parent=1 // pred_check
      _
    $region11: #{tpu_custom_call.1} parent=1 // pred_check_branch
      %47 = sbr.rel (0) target = $region13
    $region12: #{tpu_custom_call.1} parent=1 // pred_region
      %48 = dma.done [#allocation3], 512
    $region13: #{tpu_custom_call.1} parent=1 // pred_fallthru
      _
    // Predicated region
    $region14: #{tpu_custom_call.1} parent=1 // pred_check
      _
    $region15: #{tpu_custom_call.1} parent=1 // pred_check_branch
      %50 = sbr.rel (0) target = $region17
    $region16: #{tpu_custom_call.1} parent=1 // pred_region
      %51 = dma.done [#allocation6], 512
    $region17: #{tpu_custom_call.1} parent=1 // pred_fallthru
      _
    %s52 = sadd.s32 0, 0
    %p53 = scmp.lt.s32.totalorder %s52, 0
    %s54 = scalar_select %p53, %s52, 0
    %s55 = smul.u32 4, %s54
    %s56 = sadd.s32 0, 0
    %p57 = scmp.lt.s32.totalorder %s56, 0
    %s58 = scalar_select %p57, %s56, 0
    %s59 = smul.u32 4, %s58
    %p60 = scmp.eq.s32.totalorder 0, 0
    // Predicated region
    $region18: #{tpu_custom_call.1} parent=1 // pred_check
      %p61 = pneg %p60
    $region19: #{tpu_custom_call.1} parent=1 // pred_check_branch
      %63 = sbr.rel (%p61) target = $region21
    $region20: #{tpu_custom_call.1} parent=1 // pred_region
      %64 = vst [vmem:[#allocation7] sm:$0xff] 0.0
    $region21: #{tpu_custom_call.1} parent=1 // pred_fallthru
      _
    %v65 = vld [vmem:[#allocation2] sm:$0xff]
    %v66 = vld [vmem:[#allocation2 + $0x8] sm:$0xff]
    %v67 = vld [vmem:[#allocation2 + $0x10] sm:$0xff]
    %v68 = vld [vmem:[#allocation2 + $0x18] sm:$0xff]
    %v69 = vld [vmem:[#allocation5] sm:$0xff]
    %v70 = vld [vmem:[#allocation5 + $0x8] sm:$0xff]
    %v71 = vld [vmem:[#allocation5 + $0x10] sm:$0xff]
    %v72 = vld [vmem:[#allocation5 + $0x18] sm:$0xff]
    %s73 = sadd.s32 0, 0
    %s74 = smul.u32 %s73, 32
    %v75 = vlaneseq
    %v76 = vshrl.u32 %v75, 7
    %v77 = vadd.s32 %v76, 8
    %v78 = vadd.s32 %v76, 16
    %v79 = vadd.s32 %v76, 24
    %v80 = vstv %s74
    %v81 = vadd.s32 %v80, %v76
    %v82 = vadd.s32 %v80, %v77
    %v83 = vadd.s32 %v80, %v78
    %v84 = vadd.s32 %v80, %v79
    %vm85 = vcmp.lt.s32.totalorder %v81, 4
    %vm86 = vcmp.lt.s32.totalorder %v82, 4
    %vm87 = vcmp.lt.s32.totalorder %v83, 4
    %vm88 = vcmp.lt.s32.totalorder %v84, 4
    %v89 = vsel %vm85, %v65, 0.0
    %v90 = vsel %vm86, %v66, 0.0
    %v91 = vsel %vm87, %v67, 0.0
    %v92 = vsel %vm88, %v68, 0.0
    %v93 = vsel %vm85, %v69, -1.0
    %v94 = vsel %vm86, %v70, -1.0
    %v95 = vsel %vm87, %v71, -1.0
    %v96 = vsel %vm88, %v72, -1.0
    %v97 = vmax.f32 %v89, 0.0
    %v98 = vmax.f32 %v90, 0.0
    %v99 = vmax.f32 %v91, 0.0
    %v100 = vmax.f32 %v92, 0.0
    %v101 = vmul.f32 %v89, %v93
    %v102 = vmul.f32 %v90, %v94
    %v103 = vmul.f32 %v91, %v95
    %v104 = vmul.f32 %v92, %v96
    %v105 = vsub.f32 %v97, %v101
    %v106 = vsub.f32 %v98, %v102
    %v107 = vsub.f32 %v99, %v103
    %v108 = vsub.f32 %v100, %v104
    %v109 = vand.u32 2147483647, %v89
    %v110 = vand.u32 2147483647, %v90
    %v111 = vand.u32 2147483647, %v91
    %v112 = vand.u32 2147483647, %v92
    %v113 = vsub.f32 0.0, %v109
    %v114 = vsub.f32 0.0, %v110
    %v115 = vsub.f32 0.0, %v111
    %v116 = vsub.f32 0.0, %v112
    %v117 = vmul.f32 %v113, 1.442695
    %v118 = vpow.pop %v117
    %v119 = vmul.f32 %v114, 1.442695
    %v120 = vpow.pop %v119
    %v121 = vmul.f32 %v115, 1.442695
    %v122 = vpow.pop %v121
    %v123 = vmul.f32 %v116, 1.442695
    %v124 = vpow.pop %v123
    %v125 = vadd.f32 %v118, 1.0
    %v126 = vlog2.pop %v125
    %v127 = vmul.f32 %v126, 0.6931472
    %v128 = vmul.f32 -0.5, %v118
    %v129 = vadd.f32 %v128, 1.0
    %v130 = vmul.f32 %v129, %v118
    %v131 = vand.u32 2147483647, %v118
    %vm132 = vcmp.lt.f32.partialorder %v131, 0.0004427343
    %v133 = vsel %vm132, %v130, %v127
    %v134 = vadd.f32 %v120, 1.0
    %v135 = vlog2.pop %v134
    %v136 = vmul.f32 %v135, 0.6931472
    %v137 = vmul.f32 -0.5, %v120
    %v138 = vadd.f32 %v137, 1.0
    %v139 = vmul.f32 %v138, %v120
    %v140 = vand.u32 2147483647, %v120
    %vm141 = vcmp.lt.f32.partialorder %v140, 0.0004427343
    %v142 = vsel %vm141, %v139, %v136
    %v143 = vadd.f32 %v122, 1.0
    %v144 = vlog2.pop %v143
    %v145 = vmul.f32 %v144, 0.6931472
    %v146 = vmul.f32 -0.5, %v122
    %v147 = vadd.f32 %v146, 1.0
    %v148 = vmul.f32 %v147, %v122
    %v149 = vand.u32 2147483647, %v122
    %vm150 = vcmp.lt.f32.partialorder %v149, 0.0004427343
    %v151 = vsel %vm150, %v148, %v145
    %v152 = vadd.f32 %v124, 1.0
    %v153 = vlog2.pop %v152
    %v154 = vmul.f32 %v153, 0.6931472
    %v155 = vmul.f32 -0.5, %v124
    %v156 = vadd.f32 %v155, 1.0
    %v157 = vmul.f32 %v156, %v124
    %v158 = vand.u32 2147483647, %v124
    %vm159 = vcmp.lt.f32.partialorder %v158, 0.0004427343
    %v160 = vsel %vm159, %v157, %v154
    %v161 = vadd.f32 %v105, %v133
    %v162 = vadd.f32 %v106, %v142
    %v163 = vadd.f32 %v107, %v151
    %v164 = vadd.f32 %v108, %v160
    %vm165 = vcmp.eq.f32.partialorder %v93, 1.0
    %vm166 = vcmp.eq.f32.partialorder %v94, 1.0
    %vm167 = vcmp.eq.f32.partialorder %v95, 1.0
    %vm168 = vcmp.eq.f32.partialorder %v96, 1.0
    %vm169 = vcmp.eq.f32.partialorder %v93, 0.0
    %vm170 = vcmp.eq.f32.partialorder %v94, 0.0
    %vm171 = vcmp.eq.f32.partialorder %v95, 0.0
    %vm172 = vcmp.eq.f32.partialorder %v96, 0.0
    %v173 = vsel %vm169, 0.2, 0.0
    %v174 = vsel %vm170, 0.2, 0.0
    %v175 = vsel %vm171, 0.2, 0.0
    %v176 = vsel %vm172, 0.2, 0.0
    %v177 = vsel %vm165, 1.0, %v173
    %v178 = vsel %vm166, 1.0, %v174
    %v179 = vsel %vm167, 1.0, %v175
    %v180 = vsel %vm168, 1.0, %v176
    %v181 = vmul.f32 %v161, %v177
    %v182 = vmul.f32 %v162, %v178
    %v183 = vmul.f32 %v163, %v179
    %v184 = vmul.f32 %v164, %v180
    %v185 = vadd.f32 %v181, %v182
    %v186 = vadd.f32 %v185, %v183
    %v187 = vadd.f32 %v186, %v184
    %v188 = vld [vmem:[#allocation7] sm:$0xff]
    %v189 = vadd.f32 %v188, %v187
    %190 = vst [vmem:[#allocation7] sm:$0xff] %v189
    // Predicated region
    $region22: #{tpu_custom_call.1} parent=1 // pred_check
      _
    $region23: #{tpu_custom_call.1} parent=1 // pred_check_branch
      %192 = sbr.rel (0) target = $region25
    $region24: #{tpu_custom_call.1} parent=1 // pred_region
      %s194 = ssub.s32 128, 128
      %195 = vsyncadd [#allocation4], %s194
      %s197 = sshll.u32 [#allocation7], 4
      %s198 = int_to_ptr.vmem [resolvable:$true] %s197
      %200 = dma.vmem_to_hbm [thread:$0]  %s198, 128, %s2, [#allocation4]
    $region25: #{tpu_custom_call.1} parent=1 // pred_fallthru
      _
    // Predicated region
    $region26: #{tpu_custom_call.1} parent=1 // pred_check
      _
    $region27: #{tpu_custom_call.1} parent=1 // pred_check_branch
      %202 = sbr.rel (0) target = $region29
    $region28: #{tpu_custom_call.1} parent=1 // pred_region
      %203 = dma.done [#allocation4], 128
    $region29: #{tpu_custom_call.1} parent=1 // pred_fallthru
      _
    %204 = vsyncpa [#allocation3], 1
    %205 = vsyncpa [#allocation6], 1
    %206 = vsyncpa [#allocation4], 1

</llo_original>
